<compile_context>
chip_gen: v7x
topology: tpu7x:2x2x1
jax: 0.10.0
libtpu: 0.0.40
codegen_flags: <defaults>
</compile_context>

<pallas_src>
import functools

import jax
import jax.numpy as jnp
from jax import lax
from jax.experimental import pallas as pl
from jax.experimental.pallas import tpu as pltpu

_EPS = 1e-6  # nn.PairwiseDistance default eps
_MAX_TILE_ROWS = 2048  # 3 inputs x 2 buffers x (2048 x 128 x 4B) ~= 6 MiB VMEM


def _round_up(x, m):
    return ((x + m - 1) // m) * m


def _distances(a, p, n, swap):
    # Cast only if needed (no-op for f32 inputs).
    if a.dtype != jnp.float32:
        a = a.astype(jnp.float32)
    if p.dtype != jnp.float32:
        p = p.astype(jnp.float32)
    if n.dtype != jnp.float32:
        n = n.astype(jnp.float32)
    # nn.PairwiseDistance(p=2, eps=1e-6): ||x1 - x2 + eps||_2 over the last dim.
    d_ap = a - p + _EPS
    d_an = a - n + _EPS
    pos = jnp.sqrt(jnp.sum(d_ap * d_ap, axis=-1, keepdims=True))  # (TN, 1)
    neg = jnp.sqrt(jnp.sum(d_an * d_an, axis=-1, keepdims=True))  # (TN, 1)
    if swap:
        d_pn = p - n + _EPS
        sw = jnp.sqrt(jnp.sum(d_pn * d_pn, axis=-1, keepdims=True))
        neg = jnp.minimum(neg, sw)
    return pos, neg


def _partial_sum_kernel(margin_ref, a_ref, p_ref, n_ref, out_ref, *,
                        swap, n_valid, tile_n):
    """One grid step: partial sum of clamped triplet losses for this row tile."""
    pos, neg = _distances(a_ref[...], p_ref[...], n_ref[...], swap)
    margin = margin_ref[0]
    loss = jnp.maximum(pos - neg + margin, 0.0)  # (TN, 1)

    # Mask rows beyond the true batch size (padding rows are all-zero and
    # would otherwise each contribute `margin` to the sum).
    row = pl.program_id(0) * tile_n + lax.broadcasted_iota(
        jnp.int32, (tile_n, 1), 0)
    loss = jnp.where(row < n_valid, loss, 0.0)

    tile_sum = jnp.sum(loss)
    out_ref[...] = jnp.full(out_ref.shape, tile_sum, out_ref.dtype)


def _per_row_kernel(margin_ref, a_ref, p_ref, n_ref, out_ref, *, swap):
    """One grid step: per-row losses for reduction='none'."""
    pos, neg = _distances(a_ref[...], p_ref[...], n_ref[...], swap)
    margin = margin_ref[0]
    out_ref[...] = jnp.maximum(pos - neg + margin, 0.0)  # (TN, 1)


def triplet_margin_with_distance_loss(anchor, positive, negative, margin, *,
                                      swap=False, reduction="mean",
                                      tile_n=None):
    """Pallas equivalent of MyTripletMarginWithDistanceLoss.forward.

    anchor/positive/negative: (N, D) float32. margin: scalar.
    Returns a scalar for reduction 'mean'/'sum', or (N,) for 'none'.
    """
    N, D = anchor.shape

    if tile_n is None:
        tile_n = min(_MAX_TILE_ROWS, _round_up(N, 8))
    tile_n = max(8, _round_up(int(tile_n), 8))
    n_pad = _round_up(N, tile_n)
    num_tiles = n_pad // tile_n

    if n_pad != N:
        pad = [(0, n_pad - N), (0, 0)]
        anchor = jnp.pad(anchor, pad)
        positive = jnp.pad(positive, pad)
        negative = jnp.pad(negative, pad)

    margin_arr = jnp.asarray(margin, jnp.float32).reshape(1)

    in_specs = [
        pl.BlockSpec(memory_space=pltpu.SMEM),         # margin (resident scalar)
        pl.BlockSpec((tile_n, D), lambda i: (i, 0)),   # anchor tile
        pl.BlockSpec((tile_n, D), lambda i: (i, 0)),   # positive tile
        pl.BlockSpec((tile_n, D), lambda i: (i, 0)),   # negative tile
    ]

    itemsize = jnp.dtype(anchor.dtype).itemsize
    bytes_in = 3 * n_pad * D * itemsize

    if reduction in ("mean", "sum"):
        # One (8,128)-shaped partial-sum slab per tile -> safe TPU layout and
        # allows the batch axis to stay "parallel" (megacore on v7x).
        out_shape = jax.ShapeDtypeStruct((num_tiles, 8, 128), jnp.float32)
        out_spec = pl.BlockSpec((1, 8, 128), lambda i: (i, 0, 0))
        kernel = functools.partial(_partial_sum_kernel, swap=swap,
                                   n_valid=N, tile_n=tile_n)
        bytes_out = num_tiles * 8 * 128 * 4
    else:  # 'none'
        # TODO(synk): a fully lane-dense (N//128, 128) 'none' output would avoid
        # masked vst on the store path; kept (N,1) since output bytes are tiny.
        out_shape = jax.ShapeDtypeStruct((n_pad, 1), jnp.float32)
        out_spec = pl.BlockSpec((tile_n, 1), lambda i: (i, 0))
        kernel = functools.partial(_per_row_kernel, swap=swap)
        bytes_out = n_pad * 4

    cost = pl.CostEstimate(
        flops=(12 if swap else 8) * n_pad * D,
        transcendentals=(3 if swap else 2) * n_pad,
        bytes_accessed=bytes_in + bytes_out,
    )

    out = pl.pallas_call(
        kernel,
        out_shape=out_shape,
        grid=(num_tiles,),
        in_specs=in_specs,
        out_specs=out_spec,
        compiler_params=pltpu.CompilerParams(
            dimension_semantics=("parallel",)),
        cost_estimate=cost,
    )(margin_arr, anchor, positive, negative)

    if reduction == "mean":
        return jnp.sum(out[:, 0, 0]) / N
    if reduction == "sum":
        return jnp.sum(out[:, 0, 0])
    return out[:N, 0]


def _reference(anchor, positive, negative, margin, *, swap=False,
               reduction="mean"):
    pd = jnp.sqrt(jnp.sum((anchor - positive + _EPS) ** 2, axis=-1))
    nd = jnp.sqrt(jnp.sum((anchor - negative + _EPS) ** 2, axis=-1))
    if swap:
        sd = jnp.sqrt(jnp.sum((positive - negative + _EPS) ** 2, axis=-1))
        nd = jnp.minimum(nd, sd)
    out = jnp.maximum(pd - nd + margin, 0.0)
    if reduction == "mean":
        return jnp.mean(out)
    if reduction == "sum":
        return jnp.sum(out)
    return out


if __name__ == "__main__":
    key = jax.random.PRNGKey(0)
    k1, k2, k3 = jax.random.split(key, 3)
    margin = jnp.float32(1.0)

    # Default module config (swap=False, reduction='mean'), small shapes.
    N, D = 8, 128
    anchor = jax.random.normal(k1, (N, D), jnp.float32)
    positive = jax.random.normal(k2, (N, D), jnp.float32)
    negative = jax.random.normal(k3, (N, D), jnp.float32)

    loss = triplet_margin_with_distance_loss(anchor, positive, negative, margin)
    jax.block_until_ready(loss)
    ref = _reference(anchor, positive, negative, margin)
    assert jnp.allclose(loss, ref, atol=1e-4, rtol=1e-4), (loss, ref)

    # Multi-tile grid + padded/masked rows (N not a multiple of tile_n),
    # all reductions, with and without swap.
    N2 = 20
    a2 = jax.random.normal(k1, (N2, D), jnp.float32)
    p2 = jax.random.normal(k2, (N2, D), jnp.float32)
    n2 = jax.random.normal(k3, (N2, D), jnp.float32)
    for red in ("mean", "sum", "none"):
        for sw in (False, True):
            got = triplet_margin_with_distance_loss(
                a2, p2, n2, margin, swap=sw, reduction=red, tile_n=8)
            jax.block_until_ready(got)
            want = _reference(a2, p2, n2, margin, swap=sw, reduction=red)
            assert jnp.allclose(got, want, atol=1e-4, rtol=1e-4), (
                red, sw, got, want)

    print("KERNEL_OK")
</pallas_src>

<mosaic_0001>
module attributes {stable_mosaic.version = 11 : i64} {
  func.func @_partial_sum_kernel(%arg0: i32, %arg1: memref<1xf32, #tpu.memory_space<smem>>, %arg2: memref<8x128xf32, #tpu.memory_space<vmem>>, %arg3: memref<8x128xf32, #tpu.memory_space<vmem>>, %arg4: memref<8x128xf32, #tpu.memory_space<vmem>>, %arg5: memref<1x8x128xf32, #tpu.memory_space<vmem>>) attributes {dimension_semantics = [#tpu.dimension_semantics<parallel>], iteration_bounds = array<i64: 1>, scalar_prefetch = 0 : i64, scratch_operands = 0 : i64, tpu.core_type = #tpu.core_type<tc>, window_params = [{transform_indices = @transform_0, window_bounds = array<i64: 1>}, {transform_indices = @transform_1, window_bounds = array<i64: 8, 128>}, {transform_indices = @transform_2, window_bounds = array<i64: 8, 128>}, {transform_indices = @transform_3, window_bounds = array<i64: 8, 128>}, {transform_indices = @transform_4, window_bounds = array<i64: 1, 8, 128>}]} {
    %c0 = arith.constant 0 : index
    %c0_0 = arith.constant 0 : index
    %0 = vector.load %arg2[%c0, %c0_0] : memref<8x128xf32, #tpu.memory_space<vmem>>, vector<8x128xf32>
    %c0_1 = arith.constant 0 : index
    %c0_2 = arith.constant 0 : index
    %1 = vector.load %arg3[%c0_1, %c0_2] : memref<8x128xf32, #tpu.memory_space<vmem>>, vector<8x128xf32>
    %c0_3 = arith.constant 0 : index
    %c0_4 = arith.constant 0 : index
    %2 = vector.load %arg4[%c0_3, %c0_4] : memref<8x128xf32, #tpu.memory_space<vmem>>, vector<8x128xf32>
    %3 = arith.subf %0, %1 : vector<8x128xf32>
    %cst = arith.constant 9.99999997E-7 : f32
    %4 = vector.broadcast %cst : f32 to vector<8x128xf32>
    %5 = arith.addf %3, %4 : vector<8x128xf32>
    %6 = arith.subf %0, %2 : vector<8x128xf32>
    %cst_5 = arith.constant 9.99999997E-7 : f32
    %7 = vector.broadcast %cst_5 : f32 to vector<8x128xf32>
    %8 = arith.addf %6, %7 : vector<8x128xf32>
    %9 = arith.mulf %5, %5 : vector<8x128xf32>
    %cst_6 = arith.constant dense<0.000000e+00> : vector<8xf32>
    %10 = vector.multi_reduction <add>, %9, %cst_6 [1] : vector<8x128xf32> to vector<8xf32>
    %11 = vector.shape_cast %10 : vector<8xf32> to vector<8x1xf32>
    %12 = math.sqrt %11 : vector<8x1xf32>
    %13 = arith.mulf %8, %8 : vector<8x128xf32>
    %cst_7 = arith.constant dense<0.000000e+00> : vector<8xf32>
    %14 = vector.multi_reduction <add>, %13, %cst_7 [1] : vector<8x128xf32> to vector<8xf32>
    %15 = vector.shape_cast %14 : vector<8xf32> to vector<8x1xf32>
    %16 = math.sqrt %15 : vector<8x1xf32>
    %c0_8 = arith.constant 0 : index
    %17 = memref.load %arg1[%c0_8] : memref<1xf32, #tpu.memory_space<smem>>
    %18 = arith.subf %12, %16 : vector<8x1xf32>
    %19 = vector.broadcast %17 : f32 to vector<8x1xf32>
    %20 = arith.addf %18, %19 : vector<8x1xf32>
    %cst_9 = arith.constant 0.000000e+00 : f32
    %21 = vector.broadcast %cst_9 : f32 to vector<8x1xf32>
    %22 = arith.maximumf %20, %21 : vector<8x1xf32>
    %c8_i32 = arith.constant 8 : i32
    %23 = arith.muli %arg0, %c8_i32 : i32
    %24 = tpu.iota {dimensions = array<i32: 0>} : vector<8x1xi32>
    %25 = vector.broadcast %23 : i32 to vector<8x1xi32>
    %26 = arith.addi %25, %24 : vector<8x1xi32>
    %c8_i32_10 = arith.constant 8 : i32
    %27 = vector.broadcast %c8_i32_10 : i32 to vector<8x1xi32>
    %28 = arith.cmpi slt, %26, %27 : vector<8x1xi32>
    %cst_11 = arith.constant 0.000000e+00 : f32
    %29 = vector.broadcast %cst_11 : f32 to vector<8x1xf32>
    %30 = arith.select %28, %22, %29 : vector<8x1xi1>, vector<8x1xf32>
    %31 = vector.shape_cast %30 : vector<8x1xf32> to vector<1x8x1xf32>
    %cst_12 = arith.constant dense<0.000000e+00> : vector<1xf32>
    %32 = vector.multi_reduction <add>, %31, %cst_12 [1, 2] : vector<1x8x1xf32> to vector<1xf32>
    %33 = vector.shape_cast %32 : vector<1xf32> to vector<1x1x1xf32>
    %34 = vector.extract %33[0, 0, 0] : f32 from vector<1x1x1xf32>
    %35 = vector.broadcast %34 : f32 to vector<1x8x128xf32>
    %c0_13 = arith.constant 0 : index
    %c0_14 = arith.constant 0 : index
    %c0_15 = arith.constant 0 : index
    %36 = vector.load %arg5[%c0_13, %c0_14, %c0_15] : memref<1x8x128xf32, #tpu.memory_space<vmem>>, vector<1x8x128xf32>
    tpu.vector_store %arg5[%c0_13, %c0_14, %c0_15], %35 {strides = array<i32>} : memref<1x8x128xf32, #tpu.memory_space<vmem>>, vector<1x8x128xf32>,
    return
  }
  func.func @transform_0(%arg0: i32) -> i32 {
    %c0_i32 = arith.constant 0 : i32
    %c0_i32_0 = arith.constant 0 : i32
    return %c0_i32 : i32
  }
  func.func @transform_1(%arg0: i32) -> (i32, i32) {
    %c0_i32 = arith.constant 0 : i32
    %c0_i32_0 = arith.constant 0 : i32
    return %arg0, %c0_i32 : i32, i32
  }
  func.func @transform_2(%arg0: i32) -> (i32, i32) {
    %c0_i32 = arith.constant 0 : i32
    %c0_i32_0 = arith.constant 0 : i32
    return %arg0, %c0_i32 : i32, i32
  }
  func.func @transform_3(%arg0: i32) -> (i32, i32) {
    %c0_i32 = arith.constant 0 : i32
    %c0_i32_0 = arith.constant 0 : i32
    return %arg0, %c0_i32 : i32, i32
  }
  func.func @transform_4(%arg0: i32) -> (i32, i32, i32) {
    %c0_i32 = arith.constant 0 : i32
    %c0_i32_0 = arith.constant 0 : i32
    %c0_i32_1 = arith.constant 0 : i32
    return %arg0, %c0_i32, %c0_i32_0 : i32, i32, i32
  }
}

</mosaic_0001>

<llo_original>
// kernel: tpu_custom_call.1
$region0: #{tpu_custom_call.1}
  #allocation0 [shape = 'u32[]', space=smem, size = 0x4, offset = 0x4, fixed_abs, tag = 'smem constant byte address 0x4 - core index']
  #allocation1 [shape = 'u32[144,128]{1,0:T(1,128)}', space=vmem, size = 0x12000, scoped, tag = 'internal scratch']
  #allocation2 [shape = 'f32[1]{0:T(128)S(6)}', space=smem, size = 0x200, scoped, tag = 'scoped memory for tpu_custom_call.1']
  %s0 = inlined_call_operand.<no memory space> [shape: f32[1], index: 0, kind: input, shape index: {}]
  %s1 = inlined_call_operand.hbm [shape: f32[8,128], index: 1, kind: input, shape index: {}]
  %s2 = inlined_call_operand.hbm [shape: f32[8,128], index: 2, kind: input, shape index: {}]
  %s3 = inlined_call_operand.vmem [shape: f32[8,128], index: 3, kind: input, shape index: {}]
  %s4 = inlined_call_operand.hbm [shape: f32[1,8,128], index: 4, kind: output, shape index: {}]
  %s5 = sld [smem:[#allocation0]]
  $region34: #{tpu_custom_call.1} parent=0
    _
  %s7 = ssub.s32 1, %s5
  %s8 = scalar_select 0, %s7, %s5
  %9 = sst [smem:[#allocation2]] %s0
  $region1: #{tpu_custom_call.1} parent=0
    #allocation3 [shape = 'u8[4096]{0}', space=vmem, size = 0x1000, scoped, tag = 'input window, operand 1, single buffered']
    #allocation4 [shape = 's32[1]{0}', space=sflag, size = 0x4, scoped, tag = 'scoped memory for tpu_custom_call.1']
    #allocation5 [shape = 's32[1]{0}', space=sflag, size = 0x4, scoped, tag = 'scoped memory for tpu_custom_call.1']
    #allocation6 [shape = 'u8[4096]{0}', space=vmem, size = 0x1000, scoped, tag = 'input window, operand 2, single buffered']
    #allocation7 [shape = 's32[1]{0}', space=sflag, size = 0x4, scoped, tag = 'scoped memory for tpu_custom_call.1']
    #allocation8 [shape = 'u8[4096]{0}', space=vmem, size = 0x1000, scoped, tag = 'output window, operand 0, single buffered']
    %10 = vsyncpa [#allocation4], 0
    %11 = vsyncpa [#allocation7], 0
    %12 = vsyncpa [#allocation5], 0
    // Predicated region
    $region2: #{tpu_custom_call.1} parent=1 // pred_check
      _
    $region3: #{tpu_custom_call.1} parent=1 // pred_check_branch
      %14 = sbr.rel (0) target = $region5
    $region4: #{tpu_custom_call.1} parent=1 // pred_region
      _
    $region5: #{tpu_custom_call.1} parent=1 // pred_fallthru
      _
    // Predicated region
    $region6: #{tpu_custom_call.1} parent=1 // pred_check
      _
    $region7: #{tpu_custom_call.1} parent=1 // pred_check_branch
      %16 = sbr.rel (0) target = $region9
    $region8: #{tpu_custom_call.1} parent=1 // pred_region
      %s18 = ssub.s32 128, 128
      %19 = vsyncadd [#allocation4], %s18
      %s21 = sshll.u32 [#allocation3], 4
      %s22 = int_to_ptr.vmem [resolvable:$true] %s21
      %24 = dma.hbm_to_vmem [thread:$0]  %s1, 128, %s22, [#allocation4]
    $region9: #{tpu_custom_call.1} parent=1 // pred_fallthru
      _
    // Predicated region
    $region10: #{tpu_custom_call.1} parent=1 // pred_check
      _
    $region11: #{tpu_custom_call.1} parent=1 // pred_check_branch
      %26 = sbr.rel (0) target = $region13
    $region12: #{tpu_custom_call.1} parent=1 // pred_region
      %s28 = ssub.s32 128, 128
      %29 = vsyncadd [#allocation7], %s28
      %s31 = sshll.u32 [#allocation6], 4
      %s32 = int_to_ptr.vmem [resolvable:$true] %s31
      %34 = dma.hbm_to_vmem [thread:$0]  %s2, 128, %s32, [#allocation7]
    $region13: #{tpu_custom_call.1} parent=1 // pred_fallthru
      _
    // Predicated region
    $region14: #{tpu_custom_call.1} parent=1 // pred_check
      _
    $region15: #{tpu_custom_call.1} parent=1 // pred_check_branch
      %36 = sbr.rel (0) target = $region17
    $region16: #{tpu_custom_call.1} parent=1 // pred_region
      _
    $region17: #{tpu_custom_call.1} parent=1 // pred_fallthru
      _
    // Predicated region
    $region18: #{tpu_custom_call.1} parent=1 // pred_check
      _
    $region19: #{tpu_custom_call.1} parent=1 // pred_check_branch
      %38 = sbr.rel (0) target = $region21
    $region20: #{tpu_custom_call.1} parent=1 // pred_region
      %39 = dma.done [#allocation4], 128
    $region21: #{tpu_custom_call.1} parent=1 // pred_fallthru
      _
    // Predicated region
    $region22: #{tpu_custom_call.1} parent=1 // pred_check
      _
    $region23: #{tpu_custom_call.1} parent=1 // pred_check_branch
      %41 = sbr.rel (0) target = $region25
    $region24: #{tpu_custom_call.1} parent=1 // pred_region
      %42 = dma.done [#allocation7], 128
    $region25: #{tpu_custom_call.1} parent=1 // pred_fallthru
      _
    %v43 = vld [vmem:[#allocation3] sm:$0xff]
    %v44 = vld [vmem:[#allocation6] sm:$0xff]
    %v45 = vld [vmem:[%s3] sm:$0xff]
    %v46 = vsub.f32 %v43, %v44
    %v47 = vadd.f32 %v46, 1e-06
    %v48 = vsub.f32 %v43, %v45
    %v49 = vadd.f32 %v48, 1e-06
    %v50 = vmul.f32 %v47, %v47
    %51 = vadd.xlane.f32.xlu0 %v50
    %v52 = vpop.xlane.xlu0 %51
    %v53 = vrsqrt.pop %v52
    %v54 = vmul.f32 %v52, %v53
    %vm55 = vcmp.eq.f32.partialorder %v52, inf
    %v56 = vsel %vm55, %v52, %v54
    %vm57 = vcmp.eq.f32.partialorder %v52, 0.0
    %v58 = vand.u32 %v52, 2147483648
    %v59 = vsel %vm57, %v58, %v56
    %v60 = vmul.f32 %v49, %v49
    %61 = vadd.xlane.f32.xlu0 %v60
    %v62 = vpop.xlane.xlu0 %61
    %v63 = vrsqrt.pop %v62
    %v64 = vmul.f32 %v62, %v63
    %vm65 = vcmp.eq.f32.partialorder %v62, inf
    %v66 = vsel %vm65, %v62, %v64
    %vm67 = vcmp.eq.f32.partialorder %v62, 0.0
    %v68 = vand.u32 %v62, 2147483648
    %v69 = vsel %vm67, %v68, %v66
    %s70 = sld [smem:[#allocation2]]
    %v71 = vsub.f32 %v59, %v69
    %v72 = vstv %s70
    %v73 = vadd.f32 %v71, %v72
    %v74 = vmax.f32 %v73, 0.0
    %s75 = smul.u32 0, 8
    %v76 = vlaneseq
    %v77 = vshrl.u32 %v76, 7
    %v78 = vstv %s75
    %v79 = vadd.s32 %v78, %v77
    %vm80 = vcmp.lt.s32.totalorder %v79, 8
    %v81 = vsel %vm80, %v74, 0.0
    %vm82 = vcmask 7168
    %v83 = vsel %vm82, %v81, 0.0
    %84 = vadd.xlane.f32.xlu0 %v83
    %v85 = vpop.xlane.xlu0 %84
    %v86 = vrot.slane %v85, 4
    %v87 = vadd.f32 %v85, %v86
    %v88 = vrot.slane %v87, 2
    %v89 = vadd.f32 %v87, %v88
    %v90 = vrot.slane %v89, 1
    %v91 = vadd.f32 %v89, %v90
    %s92 = vtos %v91
    %v93 = vstv %s92
    %94 = vst [vmem:[#allocation8] sm:$0xff] %v93
    // Predicated region
    $region26: #{tpu_custom_call.1} parent=1 // pred_check
      _
    $region27: #{tpu_custom_call.1} parent=1 // pred_check_branch
      %96 = sbr.rel (0) target = $region29
    $region28: #{tpu_custom_call.1} parent=1 // pred_region
      %s98 = ssub.s32 128, 128
      %99 = vsyncadd [#allocation5], %s98
      %s101 = sshll.u32 [#allocation8], 4
      %s102 = int_to_ptr.vmem [resolvable:$true] %s101
      %104 = dma.vmem_to_hbm [thread:$0]  %s102, 128, %s4, [#allocation5]
    $region29: #{tpu_custom_call.1} parent=1 // pred_fallthru
      _
    // Predicated region
    $region30: #{tpu_custom_call.1} parent=1 // pred_check
      _
    $region31: #{tpu_custom_call.1} parent=1 // pred_check_branch
      %106 = sbr.rel (0) target = $region33
    $region32: #{tpu_custom_call.1} parent=1 // pred_region
      %107 = dma.done [#allocation5], 128
    $region33: #{tpu_custom_call.1} parent=1 // pred_fallthru
      _
    %108 = vsyncpa [#allocation4], 1
    %109 = vsyncpa [#allocation7], 1
    %110 = vsyncpa [#allocation5], 1

</llo_original>
